<compile_context>
chip_gen: v5e
topology: v5e:2x2
jax: 0.10.0
libtpu: 0.0.40
codegen_flags: <defaults>
</compile_context>

<pallas_src>
import math

import jax
import jax.numpy as jnp
from jax.experimental import pallas as pl
from jax.experimental.pallas import tpu as pltpu

OUT_CLASSES = 6
OUT_PAD = 128  # lane-dense output width (multiple of 128)


def _round_up(x, m):
    return ((x + m - 1) // m) * m


def mlp_kernel(x_ref,
               w1_ref, b1_ref,
               w2_ref, b2_ref,
               w3_ref, b3_ref,
               w4_ref, b4_ref,
               out_ref):
    # layer1 -> relu   (BN1 already folded into layer2's weights/bias)
    h = jnp.dot(x_ref[...], w1_ref[...],
                preferred_element_type=jnp.float32) + b1_ref[...]
    h = jnp.maximum(h, 0.0).astype(jnp.bfloat16)

    # layer2 (BN1 folded in) -> relu
    h = jnp.dot(h, w2_ref[...],
                preferred_element_type=jnp.float32) + b2_ref[...]
    h = jnp.maximum(h, 0.0).astype(jnp.bfloat16)

    # layer3 (BN2 folded in) -> relu
    h = jnp.dot(h, w3_ref[...],
                preferred_element_type=jnp.float32) + b3_ref[...]
    h = jnp.maximum(h, 0.0).astype(jnp.bfloat16)

    # layer4 (BN3 folded in, padded to 128 lanes) -> softmax over last dim.
    # Padded columns carry bias -1e30 -> exp underflows to exactly 0.
    logits = jnp.dot(h, w4_ref[...],
                     preferred_element_type=jnp.float32) + b4_ref[...]
    m = jnp.max(logits, axis=-1, keepdims=True)
    e = jnp.exp(logits - m)
    denom = jnp.sum(e, axis=-1, keepdims=True)
    out_ref[...] = e * pl.reciprocal(denom, approx=True)


def model2_forward(x, params, tile_b=512):
    """x: [B, in_features] float32. params: dict from init_params()."""
    B, F_in = x.shape

    # Pick a batch tile: multiple of 8 sublanes, no bigger than needed.
    tile_b = max(8, min(tile_b, _round_up(B, 8)))
    B_pad = _round_up(B, tile_b)
    if B_pad != B:
        x = jnp.pad(x, ((0, B_pad - B), (0, 0)))
    x = x.astype(jnp.bfloat16)

    grid = (pl.cdiv(B_pad, tile_b),)

    def const_spec(arr):
        return pl.BlockSpec(arr.shape, lambda i: (0, 0))

    w_args = (
        params["w1"], params["b1"],
        params["w2"], params["b2"],
        params["w3"], params["b3"],
        params["w4"], params["b4"],
    )

    in_specs = [pl.BlockSpec((tile_b, F_in), lambda i: (i, 0))]
    in_specs += [const_spec(a) for a in w_args]

    out = pl.pallas_call(
        mlp_kernel,
        out_shape=jax.ShapeDtypeStruct((B_pad, OUT_PAD), jnp.float32),
        grid=grid,
        in_specs=in_specs,
        out_specs=pl.BlockSpec((tile_b, OUT_PAD), lambda i: (i, 0)),
        compiler_params=pltpu.CompilerParams(
            dimension_semantics=("parallel",),
            vmem_limit_bytes=32 * 1024 * 1024,
        ),
    )(x, *w_args)

    return out[:B, :OUT_CLASSES]


# ----------------------------------------------------------------------------
# Host-side parameter construction (PyTorch-equivalent init, eval-mode folds).
# ----------------------------------------------------------------------------

def xavier_normal(key, out_f, in_f):
    std = math.sqrt(2.0 / (in_f + out_f))
    return std * jax.random.normal(key, (out_f, in_f), dtype=jnp.float32)


def linear_bias(key, in_f, out_f):
    bound = 1.0 / math.sqrt(in_f)
    return jax.random.uniform(key, (out_f,), minval=-bound, maxval=bound,
                              dtype=jnp.float32)


def bn_fold(dim, eps=1e-5):
    # Freshly-initialized BatchNorm1d in eval(): gamma=1, beta=0,
    # running_mean=0, running_var=1  ->  scale = 1/sqrt(1+eps), shift = 0.
    # TODO(synk): to replicate a *trained* model, fold its actual
    # running_mean/var and affine params here instead.
    gamma = jnp.ones((dim,), jnp.float32)
    beta = jnp.zeros((dim,), jnp.float32)
    mean = jnp.zeros((dim,), jnp.float32)
    var = jnp.ones((dim,), jnp.float32)
    scale = gamma / jnp.sqrt(var + eps)
    shift = beta - mean * scale
    return scale, shift


def init_params(key, in_features, l1, l2, l3):
    ks = jax.random.split(key, 8)

    # PyTorch layout [out, in] -> transpose to [in, out] for x @ W.
    W1 = xavier_normal(ks[0], l1, in_features).T
    b1 = linear_bias(ks[1], in_features, l1)
    W2 = xavier_normal(ks[2], l2, l1).T
    b2 = linear_bias(ks[3], l1, l2)
    W3 = xavier_normal(ks[4], l3, l2).T
    b3 = linear_bias(ks[5], l2, l3)
    W4 = xavier_normal(ks[6], OUT_CLASSES, l3).T
    b4 = linear_bias(ks[7], l3, OUT_CLASSES)

    s1, t1 = bn_fold(l1)
    s2, t2 = bn_fold(l2)
    s3, t3 = bn_fold(l3)

    # Fold each BN's scale/shift into the FOLLOWING Linear (ReLU precedes BN,
    # so the affine composes exactly with the next matmul in eval mode):
    #   (h*s + t) @ W + b  ==  h @ (s[:,None]*W) + (t @ W + b)
    W2f = s1[:, None] * W2
    b2f = t1 @ W2 + b2
    W3f = s2[:, None] * W3
    b3f = t2 @ W3 + b3
    W4f = s3[:, None] * W4
    b4f = t3 @ W4 + b4

    # Lane-dense final layer: pad to OUT_PAD output columns. Padded weight
    # columns are 0; padded bias is a large finite negative so softmax maps
    # those lanes to exactly 0 without any inf-inf risk.
    W4p = jnp.zeros((l3, OUT_PAD), jnp.float32).at[:, :OUT_CLASSES].set(W4f)
    b4p = jnp.full((OUT_PAD,), -1e30, jnp.float32).at[:OUT_CLASSES].set(b4f)

    bf16 = jnp.bfloat16
    return {
        "w1": W1.astype(bf16), "b1": b1.reshape(1, -1),
        "w2": W2f.astype(bf16), "b2": b2f.reshape(1, -1),
        "w3": W3f.astype(bf16), "b3": b3f.reshape(1, -1),
        "w4": W4p.astype(bf16), "b4": b4p.reshape(1, -1),
        # keep unfolded f32 copies for the reference check
        "_ref": (W1, b1, W2, b2, W3, b3, W4, b4, s1, t1, s2, t2, s3, t3),
    }


def reference_forward(x, params):
    W1, b1, W2, b2, W3, b3, W4, b4, s1, t1, s2, t2, s3, t3 = params["_ref"]
    h = jnp.maximum(x @ W1 + b1, 0.0) * s1 + t1
    h = jnp.maximum(h @ W2 + b2, 0.0) * s2 + t2
    h = jnp.maximum(h @ W3 + b3, 0.0) * s3 + t3
    return jax.nn.softmax(h @ W4 + b4, axis=-1)


if __name__ == "__main__":
    # Small, forward-consistent shapes.
    B, in_features, l1, l2, l3 = 8, 32, 64, 64, 32

    key = jax.random.PRNGKey(0)
    k_x, k_p = jax.random.split(key)
    x = jax.random.normal(k_x, (B, in_features), dtype=jnp.float32)
    params = init_params(k_p, in_features, l1, l2, l3)

    # TODO(synk): dropout (p=0.5) is identity here (eval semantics); a
    # training-mode variant would use pltpu.prng_random_bits inside the kernel.
    out = model2_forward(x, params)
    jax.block_until_ready(out)

    assert out.shape == (B, OUT_CLASSES)
    # softmax rows sum to ~1 (approx reciprocal + bf16 math -> loose tol)
    assert jnp.allclose(jnp.sum(out, axis=-1), 1.0, atol=1e-2)
    # matches the unfolded f32 reference within bf16 tolerance
    ref = reference_forward(x, params)
    assert jnp.allclose(out, ref, atol=5e-2, rtol=5e-2)
    print("KERNEL_OK")
</pallas_src>

<mosaic_0001>
module attributes {stable_mosaic.version = 11 : i64} {
  func.func @mlp_kernel(%arg0: i32, %arg1: memref<8x32xbf16, #tpu.memory_space<vmem>>, %arg2: memref<32x64xbf16, #tpu.memory_space<vmem>>, %arg3: memref<1x64xf32, #tpu.memory_space<vmem>>, %arg4: memref<64x64xbf16, #tpu.memory_space<vmem>>, %arg5: memref<1x64xf32, #tpu.memory_space<vmem>>, %arg6: memref<64x32xbf16, #tpu.memory_space<vmem>>, %arg7: memref<1x32xf32, #tpu.memory_space<vmem>>, %arg8: memref<32x128xbf16, #tpu.memory_space<vmem>>, %arg9: memref<1x128xf32, #tpu.memory_space<vmem>>, %arg10: memref<8x128xf32, #tpu.memory_space<vmem>>) attributes {dimension_semantics = [#tpu.dimension_semantics<parallel>], iteration_bounds = array<i64: 1>, scalar_prefetch = 0 : i64, scratch_operands = 0 : i64, tpu.core_type = #tpu.core_type<tc>, window_params = [{transform_indices = @transform_0, window_bounds = array<i64: 8, 32>}, {pipeline_mode = #tpu.pipeline_mode<synchronous>, transform_indices = @transform_1, window_bounds = array<i64: 32, 64>}, {pipeline_mode = #tpu.pipeline_mode<synchronous>, transform_indices = @transform_2, window_bounds = array<i64: 1, 64>}, {pipeline_mode = #tpu.pipeline_mode<synchronous>, transform_indices = @transform_3, window_bounds = array<i64: 64, 64>}, {pipeline_mode = #tpu.pipeline_mode<synchronous>, transform_indices = @transform_4, window_bounds = array<i64: 1, 64>}, {pipeline_mode = #tpu.pipeline_mode<synchronous>, transform_indices = @transform_5, window_bounds = array<i64: 64, 32>}, {pipeline_mode = #tpu.pipeline_mode<synchronous>, transform_indices = @transform_6, window_bounds = array<i64: 1, 32>}, {pipeline_mode = #tpu.pipeline_mode<synchronous>, transform_indices = @transform_7, window_bounds = array<i64: 32, 128>}, {pipeline_mode = #tpu.pipeline_mode<synchronous>, transform_indices = @transform_8, window_bounds = array<i64: 1, 128>}, {transform_indices = @transform_9, window_bounds = array<i64: 8, 128>}]} {
    %c0 = arith.constant 0 : index
    %c0_0 = arith.constant 0 : index
    %0 = vector.load %arg1[%c0, %c0_0] : memref<8x32xbf16, #tpu.memory_space<vmem>>, vector<8x32xbf16>
    %c0_1 = arith.constant 0 : index
    %c0_2 = arith.constant 0 : index
    %1 = vector.load %arg2[%c0_1, %c0_2] : memref<32x64xbf16, #tpu.memory_space<vmem>>, vector<32x64xbf16>
    %cst = arith.constant dense<0.000000e+00> : vector<8x64xf32>
    %2 = tpu.matmul %0, %1, %cst {dimension_numbers = #tpu.dot_dimension_numbers<[1], [0], [0], [1], [0, 0, 1, 1], [], []>} : vector<8x32xbf16>, vector<32x64xbf16>, vector<8x64xf32> -> vector<8x64xf32>
    %c0_3 = arith.constant 0 : index
    %c0_4 = arith.constant 0 : index
    %3 = vector.load %arg3[%c0_3, %c0_4] : memref<1x64xf32, #tpu.memory_space<vmem>>, vector<1x64xf32>
    %4 = vector.broadcast %3 : vector<1x64xf32> to vector<8x64xf32>
    %5 = arith.addf %2, %4 : vector<8x64xf32>
    %cst_5 = arith.constant 0.000000e+00 : f32
    %6 = vector.broadcast %cst_5 : f32 to vector<8x64xf32>
    %7 = arith.maximumf %5, %6 : vector<8x64xf32>
    %8 = arith.truncf %7 : vector<8x64xf32> to vector<8x64xbf16>
    %c0_6 = arith.constant 0 : index
    %c0_7 = arith.constant 0 : index
    %9 = vector.load %arg4[%c0_6, %c0_7] : memref<64x64xbf16, #tpu.memory_space<vmem>>, vector<64x64xbf16>
    %cst_8 = arith.constant dense<0.000000e+00> : vector<8x64xf32>
    %10 = tpu.matmul %8, %9, %cst_8 {dimension_numbers = #tpu.dot_dimension_numbers<[1], [0], [0], [1], [0, 0, 1, 1], [], []>} : vector<8x64xbf16>, vector<64x64xbf16>, vector<8x64xf32> -> vector<8x64xf32>
    %c0_9 = arith.constant 0 : index
    %c0_10 = arith.constant 0 : index
    %11 = vector.load %arg5[%c0_9, %c0_10] : memref<1x64xf32, #tpu.memory_space<vmem>>, vector<1x64xf32>
    %12 = vector.broadcast %11 : vector<1x64xf32> to vector<8x64xf32>
    %13 = arith.addf %10, %12 : vector<8x64xf32>
    %cst_11 = arith.constant 0.000000e+00 : f32
    %14 = vector.broadcast %cst_11 : f32 to vector<8x64xf32>
    %15 = arith.maximumf %13, %14 : vector<8x64xf32>
    %16 = arith.truncf %15 : vector<8x64xf32> to vector<8x64xbf16>
    %c0_12 = arith.constant 0 : index
    %c0_13 = arith.constant 0 : index
    %17 = vector.load %arg6[%c0_12, %c0_13] : memref<64x32xbf16, #tpu.memory_space<vmem>>, vector<64x32xbf16>
    %cst_14 = arith.constant dense<0.000000e+00> : vector<8x32xf32>
    %18 = tpu.matmul %16, %17, %cst_14 {dimension_numbers = #tpu.dot_dimension_numbers<[1], [0], [0], [1], [0, 0, 1, 1], [], []>} : vector<8x64xbf16>, vector<64x32xbf16>, vector<8x32xf32> -> vector<8x32xf32>
    %c0_15 = arith.constant 0 : index
    %c0_16 = arith.constant 0 : index
    %19 = vector.load %arg7[%c0_15, %c0_16] : memref<1x32xf32, #tpu.memory_space<vmem>>, vector<1x32xf32>
    %20 = vector.broadcast %19 : vector<1x32xf32> to vector<8x32xf32>
    %21 = arith.addf %18, %20 : vector<8x32xf32>
    %cst_17 = arith.constant 0.000000e+00 : f32
    %22 = vector.broadcast %cst_17 : f32 to vector<8x32xf32>
    %23 = arith.maximumf %21, %22 : vector<8x32xf32>
    %24 = arith.truncf %23 : vector<8x32xf32> to vector<8x32xbf16>
    %c0_18 = arith.constant 0 : index
    %c0_19 = arith.constant 0 : index
    %25 = vector.load %arg8[%c0_18, %c0_19] : memref<32x128xbf16, #tpu.memory_space<vmem>>, vector<32x128xbf16>
    %cst_20 = arith.constant dense<0.000000e+00> : vector<8x128xf32>
    %26 = tpu.matmul %24, %25, %cst_20 {dimension_numbers = #tpu.dot_dimension_numbers<[1], [0], [0], [1], [0, 0, 1, 1], [], []>} : vector<8x32xbf16>, vector<32x128xbf16>, vector<8x128xf32> -> vector<8x128xf32>
    %c0_21 = arith.constant 0 : index
    %c0_22 = arith.constant 0 : index
    %27 = vector.load %arg9[%c0_21, %c0_22] : memref<1x128xf32, #tpu.memory_space<vmem>>, vector<1x128xf32>
    %28 = vector.broadcast %27 : vector<1x128xf32> to vector<8x128xf32>
    %29 = arith.addf %26, %28 : vector<8x128xf32>
    %cst_23 = arith.constant dense<0xFF800000> : vector<8xf32>
    %30 = vector.multi_reduction <maximumf>, %29, %cst_23 [1] : vector<8x128xf32> to vector<8xf32>
    %31 = vector.shape_cast %30 : vector<8xf32> to vector<8x1xf32>
    %32 = vector.broadcast %31 : vector<8x1xf32> to vector<8x128xf32>
    %33 = arith.subf %29, %32 : vector<8x128xf32>
    %34 = math.exp %33 : vector<8x128xf32>
    %cst_24 = arith.constant dense<0.000000e+00> : vector<8xf32>
    %35 = vector.multi_reduction <add>, %34, %cst_24 [1] : vector<8x128xf32> to vector<8xf32>
    %36 = vector.shape_cast %35 : vector<8xf32> to vector<8x1xf32>
    %37 = tpu.reciprocal %36 {approx = true} : vector<8x1xf32> -> vector<8x1xf32>
    %38 = vector.broadcast %37 : vector<8x1xf32> to vector<8x128xf32>
    %39 = arith.mulf %34, %38 : vector<8x128xf32>
    %c0_25 = arith.constant 0 : index
    %c0_26 = arith.constant 0 : index
    %40 = vector.load %arg10[%c0_25, %c0_26] : memref<8x128xf32, #tpu.memory_space<vmem>>, vector<8x128xf32>
    tpu.vector_store %arg10[%c0_25, %c0_26], %39 {strides = array<i32>} : memref<8x128xf32, #tpu.memory_space<vmem>>, vector<8x128xf32>,
    return
  }
  func.func @transform_0(%arg0: i32) -> (i32, i32) {
    %c0_i32 = arith.constant 0 : i32
    %c0_i32_0 = arith.constant 0 : i32
    return %arg0, %c0_i32 : i32, i32
  }
  func.func @transform_1(%arg0: i32) -> (i32, i32) {
    %c0_i32 = arith.constant 0 : i32
    %c0_i32_0 = arith.constant 0 : i32
    %c0_i32_1 = arith.constant 0 : i32
    return %c0_i32, %c0_i32_0 : i32, i32
  }
  func.func @transform_2(%arg0: i32) -> (i32, i32) {
    %c0_i32 = arith.constant 0 : i32
    %c0_i32_0 = arith.constant 0 : i32
    %c0_i32_1 = arith.constant 0 : i32
    return %c0_i32, %c0_i32_0 : i32, i32
  }
  func.func @transform_3(%arg0: i32) -> (i32, i32) {
    %c0_i32 = arith.constant 0 : i32
    %c0_i32_0 = arith.constant 0 : i32
    %c0_i32_1 = arith.constant 0 : i32
    return %c0_i32, %c0_i32_0 : i32, i32
  }
  func.func @transform_4(%arg0: i32) -> (i32, i32) {
    %c0_i32 = arith.constant 0 : i32
    %c0_i32_0 = arith.constant 0 : i32
    %c0_i32_1 = arith.constant 0 : i32
    return %c0_i32, %c0_i32_0 : i32, i32
  }
  func.func @transform_5(%arg0: i32) -> (i32, i32) {
    %c0_i32 = arith.constant 0 : i32
    %c0_i32_0 = arith.constant 0 : i32
    %c0_i32_1 = arith.constant 0 : i32
    return %c0_i32, %c0_i32_0 : i32, i32
  }
  func.func @transform_6(%arg0: i32) -> (i32, i32) {
    %c0_i32 = arith.constant 0 : i32
    %c0_i32_0 = arith.constant 0 : i32
    %c0_i32_1 = arith.constant 0 : i32
    return %c0_i32, %c0_i32_0 : i32, i32
  }
  func.func @transform_7(%arg0: i32) -> (i32, i32) {
    %c0_i32 = arith.constant 0 : i32
    %c0_i32_0 = arith.constant 0 : i32
    %c0_i32_1 = arith.constant 0 : i32
    return %c0_i32, %c0_i32_0 : i32, i32
  }
  func.func @transform_8(%arg0: i32) -> (i32, i32) {
    %c0_i32 = arith.constant 0 : i32
    %c0_i32_0 = arith.constant 0 : i32
    %c0_i32_1 = arith.constant 0 : i32
    return %c0_i32, %c0_i32_0 : i32, i32
  }
  func.func @transform_9(%arg0: i32) -> (i32, i32) {
    %c0_i32 = arith.constant 0 : i32
    %c0_i32_0 = arith.constant 0 : i32
    return %arg0, %c0_i32 : i32, i32
  }
}

</mosaic_0001>

<llo_original>
// kernel: tpu_custom_call.1
$region0: #{tpu_custom_call.1}
  #allocation0 [shape = 'u32[]', space=smem, size = 0x4, offset = 0x4, fixed_abs, tag = 'smem constant byte address 0x4 - core index']
  #allocation1 [shape = 'u32[72,128]{1,0:T(1,128)}', space=vmem, size = 0x9000, scoped, tag = 'internal scratch']
  %s0 = inlined_call_operand.hbm [shape: bf16[8,32], index: 0, kind: input, shape index: {}]
  %s1 = inlined_call_operand.vmem [shape: bf16[32,64], index: 1, kind: input, shape index: {}]
  %s2 = inlined_call_operand.vmem [shape: f32[1,64], index: 2, kind: input, shape index: {}]
  %s3 = inlined_call_operand.vmem [shape: bf16[64,64], index: 3, kind: input, shape index: {}]
  %s4 = inlined_call_operand.vmem [shape: f32[1,64], index: 4, kind: input, shape index: {}]
  %s5 = inlined_call_operand.vmem [shape: bf16[64,32], index: 5, kind: input, shape index: {}]
  %s6 = inlined_call_operand.vmem [shape: f32[1,32], index: 6, kind: input, shape index: {}]
  %s7 = inlined_call_operand.hbm [shape: bf16[32,128], index: 7, kind: input, shape index: {}]
  %s8 = inlined_call_operand.vmem [shape: f32[1,128], index: 8, kind: input, shape index: {}]
  %s9 = inlined_call_operand.hbm [shape: f32[8,128], index: 9, kind: output, shape index: {}]
  %s10 = sld [smem:[#allocation0]]
  $region54: #{tpu_custom_call.1} parent=0
    _
  %s12 = ssub.s32 1, %s10
  %s13 = scalar_select 0, %s12, %s10
  $region1: #{tpu_custom_call.1} parent=0
    #allocation2 [shape = 'u8[2048]{0}', space=vmem, size = 0x800, scoped, tag = 'input window, operand 0, single buffered']
    #allocation3 [shape = 's32[1]{0}', space=sflag, size = 0x4, scoped, tag = 'scoped memory for tpu_custom_call.1']
    #allocation4 [shape = 's32[1]{0}', space=sflag, size = 0x4, scoped, tag = 'scoped memory for tpu_custom_call.1']
    #allocation5 [shape = 'u8[8192]{0}', space=vmem, size = 0x2000, scoped, tag = 'input window, operand 7, single buffered']
    #allocation6 [shape = 's32[1]{0}', space=sflag, size = 0x4, scoped, tag = 'scoped memory for tpu_custom_call.1']
    #allocation7 [shape = 'u8[4096]{0}', space=vmem, size = 0x1000, scoped, tag = 'output window, operand 0, single buffered']
    %14 = vsyncpa [#allocation3], 0
    %15 = vsyncpa [#allocation6], 0
    %16 = vsyncpa [#allocation4], 0
    // Predicated region
    $region2: #{tpu_custom_call.1} parent=1 // pred_check
      _
    $region3: #{tpu_custom_call.1} parent=1 // pred_check_branch
      %18 = sbr.rel (0) target = $region5
    $region4: #{tpu_custom_call.1} parent=1 // pred_region
      %20 = vsyncadd [#allocation3], 0
      %s22 = sshll.u32 %s0, 4
      %s23 = int_to_ptr.hbm [resolvable:$true] %s22
      %s24 = sshll.u32 [#allocation2], 4
      %s25 = int_to_ptr.vmem [resolvable:$true] %s24
      %27 = dma.hbm_to_vmem [thread:$0]  %s23, 64, %s25, [#allocation3]
    $region5: #{tpu_custom_call.1} parent=1 // pred_fallthru
      _
    // Predicated region
    $region6: #{tpu_custom_call.1} parent=1 // pred_check
      _
    $region7: #{tpu_custom_call.1} parent=1 // pred_check_branch
      %29 = sbr.rel (0) target = $region9
    $region8: #{tpu_custom_call.1} parent=1 // pred_region
      _
    $region9: #{tpu_custom_call.1} parent=1 // pred_fallthru
      _
    // Predicated region
    $region10: #{tpu_custom_call.1} parent=1 // pred_check
      _
    $region11: #{tpu_custom_call.1} parent=1 // pred_check_branch
      %31 = sbr.rel (0) target = $region13
    $region12: #{tpu_custom_call.1} parent=1 // pred_region
      _
    $region13: #{tpu_custom_call.1} parent=1 // pred_fallthru
      _
    // Predicated region
    $region14: #{tpu_custom_call.1} parent=1 // pred_check
      _
    $region15: #{tpu_custom_call.1} parent=1 // pred_check_branch
      %33 = sbr.rel (0) target = $region17
    $region16: #{tpu_custom_call.1} parent=1 // pred_region
      _
    $region17: #{tpu_custom_call.1} parent=1 // pred_fallthru
      _
    // Predicated region
    $region18: #{tpu_custom_call.1} parent=1 // pred_check
      _
    $region19: #{tpu_custom_call.1} parent=1 // pred_check_branch
      %35 = sbr.rel (0) target = $region21
    $region20: #{tpu_custom_call.1} parent=1 // pred_region
      _
    $region21: #{tpu_custom_call.1} parent=1 // pred_fallthru
      _
    // Predicated region
    $region22: #{tpu_custom_call.1} parent=1 // pred_check
      _
    $region23: #{tpu_custom_call.1} parent=1 // pred_check_branch
      %37 = sbr.rel (0) target = $region25
    $region24: #{tpu_custom_call.1} parent=1 // pred_region
      _
    $region25: #{tpu_custom_call.1} parent=1 // pred_fallthru
      _
    // Predicated region
    $region26: #{tpu_custom_call.1} parent=1 // pred_check
      _
    $region27: #{tpu_custom_call.1} parent=1 // pred_check_branch
      %39 = sbr.rel (0) target = $region29
    $region28: #{tpu_custom_call.1} parent=1 // pred_region
      _
    $region29: #{tpu_custom_call.1} parent=1 // pred_fallthru
      _
    // Predicated region
    $region30: #{tpu_custom_call.1} parent=1 // pred_check
      _
    $region31: #{tpu_custom_call.1} parent=1 // pred_check_branch
      %41 = sbr.rel (0) target = $region33
    $region32: #{tpu_custom_call.1} parent=1 // pred_region
      %43 = vsyncadd [#allocation6], 0
      %s44 = sshll.u32 %s7, 4
      %s45 = int_to_ptr.hbm [resolvable:$true] %s44
      %s46 = sshll.u32 [#allocation5], 4
      %s47 = int_to_ptr.vmem [resolvable:$true] %s46
      %52 = dma.hbm_to_vmem [thread:$0]  %s45, 256, %s47, [#allocation6], 64, 64, 4
    $region33: #{tpu_custom_call.1} parent=1 // pred_fallthru
      _
    // Predicated region
    $region34: #{tpu_custom_call.1} parent=1 // pred_check
      _
    $region35: #{tpu_custom_call.1} parent=1 // pred_check_branch
      %54 = sbr.rel (0) target = $region37
    $region36: #{tpu_custom_call.1} parent=1 // pred_region
      _
    $region37: #{tpu_custom_call.1} parent=1 // pred_fallthru
      _
    // Predicated region
    $region38: #{tpu_custom_call.1} parent=1 // pred_check
      _
    $region39: #{tpu_custom_call.1} parent=1 // pred_check_branch
      %56 = sbr.rel (0) target = $region41
    $region40: #{tpu_custom_call.1} parent=1 // pred_region
      %58 = dma.done [#allocation3], 64
    $region41: #{tpu_custom_call.1} parent=1 // pred_fallthru
      _
    // Predicated region
    $region42: #{tpu_custom_call.1} parent=1 // pred_check
      _
    $region43: #{tpu_custom_call.1} parent=1 // pred_check_branch
      %60 = sbr.rel (0) target = $region45
    $region44: #{tpu_custom_call.1} parent=1 // pred_region
      %62 = dma.done [#allocation6], 256
    $region45: #{tpu_custom_call.1} parent=1 // pred_fallthru
      _
    %v64 = vld [vmem:[#allocation2] sm:$0xf]
    %v65 = vld [vmem:[%s1] sm:$0xf]
    %v66 = vld [vmem:[%s1 + $0x4] sm:$0xf]
    %v67 = vld [vmem:[%s1 + $0x8] sm:$0xf]
    %v68 = vld [vmem:[%s1 + $0xc] sm:$0xf]
    %v69 = vld [vmem:[%s2] sm:$0x1]
    %v71 = vperm.slane %v69, 0
    %v77 = vunpack.c.l.b16 %v65
    %v78 = vunpack.c.l.b16 %v66
    %v79 = vunpack.c.l.b16 %v67
    %v80 = vunpack.c.l.b16 %v68
    %v81 = vpack.c.b16 %v78, %v77
    %v82 = vpack.c.b16 %v80, %v79
    %vm85 = vcmask 261120
    %v87 = vsel %vm85, %v64, 0
    %89 = vmatpush.bf16.msra.mxu0 0
    %90 = vmatpush.bf16.msra.mxu0 0
    %91 = vmatpush.bf16.msra.mxu0 0
    %92 = vmatpush.bf16.msra.mxu0 0
    %93 = vmatpush.bf16.msra.mxu0 0
    %94 = vmatpush.bf16.msra.mxu0 0
    %95 = vmatpush.bf16.msra.mxu0 %v82
    %96 = vmatpush.bf16.msra.mxu0 %v81
    %97 = vmatmul.bf16.gmra.mxu0 %v87
    %v98 = vpop.f32.mrf.mxu0
    %v99 = vadd.f32 %v71, %v98
    %v100 = vpop.f32.mrf.mxu0
    %101 = vdwg.mxu0
    %v102 = vmax.f32 %v99, 0.0
    %v103 = vpack.c.bf16 %v102, %v102
    %v104 = vld [vmem:[%s3] sm:$0xf]
    %v105 = vld [vmem:[%s3 + $0x4] sm:$0xf]
    %v106 = vld [vmem:[%s3 + $0x8] sm:$0xf]
    %v107 = vld [vmem:[%s3 + $0xc] sm:$0xf]
    %v108 = vld [vmem:[%s3 + $0x10] sm:$0xf]
    %v109 = vld [vmem:[%s3 + $0x14] sm:$0xf]
    %v110 = vld [vmem:[%s3 + $0x18] sm:$0xf]
    %v111 = vld [vmem:[%s3 + $0x1c] sm:$0xf]
    %v112 = vld [vmem:[%s4] sm:$0x1]
    %v114 = vperm.slane %v112, 0
    %v124 = vunpack.c.l.b16 %v104
    %v125 = vunpack.c.l.b16 %v105
    %v126 = vunpack.c.l.b16 %v106
    %v127 = vunpack.c.l.b16 %v107
    %v128 = vunpack.c.l.b16 %v108
    %v129 = vunpack.c.l.b16 %v109
    %v130 = vunpack.c.l.b16 %v110
    %v131 = vunpack.c.l.b16 %v111
    %v132 = vpack.c.b16 %v125, %v124
    %v133 = vpack.c.b16 %v127, %v126
    %v134 = vpack.c.b16 %v129, %v128
    %v135 = vpack.c.b16 %v131, %v130
    %vm140 = vcmask 523264
    %v142 = vsel %vm140, %v103, 0
    %144 = vmatpush.bf16.msra.mxu0 0
    %145 = vmatpush.bf16.msra.mxu0 0
    %146 = vmatpush.bf16.msra.mxu0 0
    %147 = vmatpush.bf16.msra.mxu0 0
    %148 = vmatpush.bf16.msra.mxu0 %v135
    %149 = vmatpush.bf16.msra.mxu0 %v134
    %150 = vmatpush.bf16.msra.mxu0 %v133
    %151 = vmatpush.bf16.msra.mxu0 %v132
    %152 = vmatmul.bf16.gmra.mxu0 %v142
    %v153 = vpop.f32.mrf.mxu0
    %v154 = vadd.f32 %v114, %v153
    %v155 = vpop.f32.mrf.mxu0
    %156 = vdwg.mxu0
    %v157 = vmax.f32 %v154, 0.0
    %v158 = vpack.c.bf16 %v157, %v157
    %v159 = vld [vmem:[%s5] sm:$0xf]
    %v160 = vld [vmem:[%s5 + $0x4] sm:$0xf]
    %v161 = vld [vmem:[%s5 + $0x8] sm:$0xf]
    %v162 = vld [vmem:[%s5 + $0xc] sm:$0xf]
    %v163 = vld [vmem:[%s5 + $0x10] sm:$0xf]
    %v164 = vld [vmem:[%s5 + $0x14] sm:$0xf]
    %v165 = vld [vmem:[%s5 + $0x18] sm:$0xf]
    %v166 = vld [vmem:[%s5 + $0x1c] sm:$0xf]
    %v167 = vld [vmem:[%s6] sm:$0x1]
    %v169 = vperm.slane %v167, 0
    %v179 = vunpack.c.l.b16 %v159
    %v180 = vunpack.c.l.b16 %v160
    %v181 = vunpack.c.l.b16 %v161
    %v182 = vunpack.c.l.b16 %v162
    %v183 = vunpack.c.l.b16 %v163
    %v184 = vunpack.c.l.b16 %v164
    %v185 = vunpack.c.l.b16 %v165
    %v186 = vunpack.c.l.b16 %v166
    %v187 = vpack.c.b16 %v180, %v179
    %v188 = vpack.c.b16 %v182, %v181
    %v189 = vpack.c.b16 %v184, %v183
    %v190 = vpack.c.b16 %v186, %v185
    %v196 = vsel %vm140, %v158, 0
    %198 = vmatpush.bf16.msra.mxu0 0
    %199 = vmatpush.bf16.msra.mxu0 0
    %200 = vmatpush.bf16.msra.mxu0 0
    %201 = vmatpush.bf16.msra.mxu0 0
    %202 = vmatpush.bf16.msra.mxu0 %v190
    %203 = vmatpush.bf16.msra.mxu0 %v189
    %204 = vmatpush.bf16.msra.mxu0 %v188
    %205 = vmatpush.bf16.msra.mxu0 %v187
    %206 = vmatmul.bf16.gmra.mxu0 %v196
    %v207 = vpop.f32.mrf.mxu0
    %v208 = vadd.f32 %v169, %v207
    %v209 = vpop.f32.mrf.mxu0
    %210 = vdwg.mxu0
    %v211 = vmax.f32 %v208, 0.0
    %v212 = vpack.c.bf16 %v211, %v211
    %v213 = vld [vmem:[#allocation5] sm:$0xf]
    %v214 = vld [vmem:[#allocation5 + $0x4] sm:$0xf]
    %v215 = vld [vmem:[#allocation5 + $0x8] sm:$0xf]
    %v216 = vld [vmem:[#allocation5 + $0xc] sm:$0xf]
    %v217 = vld [vmem:[%s8] sm:$0x1]
    %v219 = vperm.slane %v217, 0
    %v225 = vunpack.c.l.b16 %v213
    %v226 = vunpack.c.l.b16 %v214
    %v227 = vunpack.c.l.b16 %v215
    %v228 = vunpack.c.l.b16 %v216
    %v229 = vpack.c.b16 %v226, %v225
    %v230 = vpack.c.b16 %v228, %v227
    %v234 = vsel %vm85, %v212, 0
    %236 = vmatpush.bf16.msra.mxu0 0
    %237 = vmatpush.bf16.msra.mxu0 0
    %238 = vmatpush.bf16.msra.mxu0 0
    %239 = vmatpush.bf16.msra.mxu0 0
    %240 = vmatpush.bf16.msra.mxu0 0
    %241 = vmatpush.bf16.msra.mxu0 0
    %242 = vmatpush.bf16.msra.mxu0 %v230
    %243 = vmatpush.bf16.msra.mxu0 %v229
    %244 = vmatmul.bf16.gmra.mxu0 %v234
    %v245 = vpop.f32.mrf.mxu0
    %v246 = vadd.f32 %v219, %v245
    %v247 = vpop.f32.mrf.mxu0
    %248 = vdwg.mxu0
    %249 = vmax.xlane.f32.xlu0 %v246
    %v250 = vpop.xlane.xlu0 %249
    %v251 = vsub.f32 %v246, %v250
    %v252 = vmul.f32 %v251, 1.442695
    %v253 = vpow.pop %v252
    %254 = vadd.xlane.f32.xlu0 %v253
    %v255 = vpop.xlane.xlu0 %254
    %v256 = vrcp.pop %v255
    %v257 = vmul.f32 %v253, %v256
    %258 = vst [vmem:[#allocation7] sm:$0xff] %v257
    // Predicated region
    $region46: #{tpu_custom_call.1} parent=1 // pred_check
      _
    $region47: #{tpu_custom_call.1} parent=1 // pred_check_branch
      %260 = sbr.rel (0) target = $region49
    $region48: #{tpu_custom_call.1} parent=1 // pred_region
      %262 = vsyncadd [#allocation4], 0
      %s264 = sshll.u32 [#allocation7], 4
      %s265 = int_to_ptr.vmem [resolvable:$true] %s264
      %s266 = sshll.u32 %s9, 4
      %s267 = int_to_ptr.hbm [resolvable:$true] %s266
      %269 = dma.vmem_to_hbm [thread:$0]  %s265, 128, %s267, [#allocation4]
    $region49: #{tpu_custom_call.1} parent=1 // pred_fallthru
      _
    // Predicated region
    $region50: #{tpu_custom_call.1} parent=1 // pred_check
      _
    $region51: #{tpu_custom_call.1} parent=1 // pred_check_branch
      %271 = sbr.rel (0) target = $region53
    $region52: #{tpu_custom_call.1} parent=1 // pred_region
      %273 = dma.done [#allocation4], 128
    $region53: #{tpu_custom_call.1} parent=1 // pred_fallthru
      _
    %274 = vsyncpa [#allocation3], 1
    %275 = vsyncpa [#allocation6], 1
    %276 = vsyncpa [#allocation4], 1

</llo_original>
